<compile_context>
chip_gen: v6e
topology: v6e:2x2x1
jax: 0.10.0
libtpu: 0.0.40
codegen_flags: <defaults>
</compile_context>

<pallas_src>
import numpy as np
import jax
import jax.numpy as jnp
from jax.experimental import pallas as pl
from jax.experimental.pallas import tpu as pltpu

N_QUBITS = 4

# --------------------------------------------------------------------------- helpers

_SINGLE_BUFFER_OK = [None]   # lazily probed: does this runtime accept pl.Buffered(1)?


def _single_buffer_ok():
    if _SINGLE_BUFFER_OK[0] is None:
        try:
            def _probe(x_ref, o_ref):
                o_ref[...] = x_ref[...] + 1.0

            x = jnp.zeros((8, 128), jnp.float32)
            out = pl.pallas_call(
                _probe,
                out_shape=jax.ShapeDtypeStruct((8, 128), jnp.float32),
                grid=(1,),
                in_specs=[pl.BlockSpec((8, 128), lambda i: (0, 0),
                                       pipeline_mode=pl.Buffered(1))],
                out_specs=pl.BlockSpec((8, 128), lambda i: (0, 0)),
            )(x)
            _SINGLE_BUFFER_OK[0] = bool(np.allclose(np.asarray(out), 1.0))
        except Exception:
            _SINGLE_BUFFER_OK[0] = False
    return _SINGLE_BUFFER_OK[0]


def _const_spec(block_shape, index_map):
    """BlockSpec for a constant-index (weight/bias/trig) block; single-buffered when
    the runtime supports pl.Buffered(1) (halves resident-weight VMEM -- v7x 64 MiB)."""
    if _single_buffer_ok():
        return pl.BlockSpec(block_shape, index_map, pipeline_mode=pl.Buffered(1))
    return pl.BlockSpec(block_shape, index_map)


def _m_tile(m):
    """Largest convenient row tile dividing m (sublane-aligned whenever m is tiled)."""
    for t in (1024, 512, 256, 128, 64, 32, 16, 8):
        if m % t == 0:
            return t
    return m   # small / irregular m: single full-extent block


# ----------------------------------------------------------------- projection kernel

def _proj_kernel(x_ref, w_ref, b_ref, o_ref):
    o_ref[...] = (jnp.dot(x_ref[...], w_ref[...],
                          preferred_element_type=jnp.float32)
                  + b_ref[...]).astype(o_ref.dtype)


def _projection(x2d, w, b):
    """(M, K) @ (K, N) + (1, N): the whole B*S is folded into the MXU M dimension."""
    M, K = x2d.shape
    N = w.shape[1]
    tm = _m_tile(M)
    flops = int(2 * M * K * N)
    bytes_acc = int(x2d.size * x2d.dtype.itemsize + w.size * w.dtype.itemsize
                    + b.size * b.dtype.itemsize + M * N * 4)
    return pl.pallas_call(
        _proj_kernel,
        out_shape=jax.ShapeDtypeStruct((M, N), jnp.float32),
        grid=(M // tm,),
        in_specs=[pl.BlockSpec((tm, K), lambda i: (i, 0)),
                  _const_spec((K, N), lambda i: (0, 0)),
                  _const_spec((1, N), lambda i: (0, 0))],
        out_specs=pl.BlockSpec((tm, N), lambda i: (i, 0)),
        compiler_params=pltpu.CompilerParams(dimension_semantics=("parallel",)),
        cost_estimate=pl.CostEstimate(flops=flops, transcendentals=0,
                                      bytes_accessed=bytes_acc),
    )(x2d, w, b)


# ------------------------------------------------------------- attention-core kernel

def _make_attn_kernel(d_k):
    inv_sqrt_dk = np.float32(1.0 / np.sqrt(d_k))
    pi = np.float32(np.pi)
    eps = np.float32(1e-8)

    def kernel(q_ref, kt_ref, v_ref, trig_ref, o_ref):
        qh = q_ref[0, 0]                       # (S, 4)   this head's quantum q features
        kt = kt_ref[0, 0]                      # (4, S)   quantum k features, pre-transposed
        vh = v_ref[0, 0]                       # (S, d_k)
        cp = trig_ref[0:1, :]                  # (1, 4)   cos(attn_params)
        sp = trig_ref[1:2, :]                  # (1, 4)   sin(attn_params)

        # per-token [0, pi] rescale over the 4 qubit values
        qmin = jnp.min(qh, axis=-1, keepdims=True)
        qmax = jnp.max(qh, axis=-1, keepdims=True)
        qn = (qh - qmin) / (qmax - qmin + eps) * pi            # (S, 4)
        kmin = jnp.min(kt, axis=0, keepdims=True)              # per-column = per token
        kmax = jnp.max(kt, axis=0, keepdims=True)
        knt = (kt - kmin) / (kmax - kmin + eps) * pi           # (4, S)

        cq = jnp.cos(qn) * cp                  # cos(p_m) cos(q_m)   (S, 4)
        sq = jnp.sin(qn) * sp                  # sin(p_m) sin(q_m)   (S, 4)
        ckt = jnp.cos(knt)                     # cos(k_m)            (4, S)

        # score[i, j] = prod_{m=1..3} ( cq[i,m] - sq[i,m] * ck[j,m] )
        # pure-VPU (S,1) x (1,S) broadcasts; no K=1 MXU outer products (v5e/v6e MRF).
        score = None
        for m in (1, 2, 3):
            term = cq[:, m:m + 1] - sq[:, m:m + 1] * ckt[m:m + 1, :]   # (S, S)
            score = term if score is None else score * term

        # stable softmax(score / sqrt(d_k)); exact divide (review correctness note)
        scaled = score * inv_sqrt_dk
        mx = jnp.max(scaled, axis=-1, keepdims=True)
        e = jnp.exp(scaled - mx)
        p = e / jnp.sum(e, axis=-1, keepdims=True)

        ctx = jnp.dot(p.astype(vh.dtype), vh, preferred_element_type=jnp.float32)
        o_ref[0, 0] = ctx.astype(o_ref.dtype)

    return kernel


def _attention_core(q_heads, kt_heads, v_heads, trig):
    """Quantum-score attention per (batch, head); grid=(B, H), both axes parallel."""
    B, H, S, _ = q_heads.shape
    d_k = v_heads.shape[-1]
    kernel = _make_attn_kernel(d_k)
    flops = int(B * H * S * S * (12 + 2 * d_k))
    trans = int(B * H * (S * S + 16 * S))          # exp + per-token cos/sin
    bytes_acc = int(4 * B * H * S * 2 * N_QUBITS + trig.size * 4
                    + B * H * S * d_k * (v_heads.dtype.itemsize + 4))
    # TODO(synk): at production S, add a KV-block grid axis ("arbitrary") with
    # online-softmax m/l scratch (flash-style) instead of the full (S, S) score --
    # needed to fit v7x's 64 MiB VMEM and to pipeline KV DMA behind compute.
    return pl.pallas_call(
        kernel,
        out_shape=jax.ShapeDtypeStruct((B, H, S, d_k), jnp.float32),
        grid=(B, H),
        in_specs=[pl.BlockSpec((1, 1, S, N_QUBITS), lambda b, h: (b, h, 0, 0)),
                  pl.BlockSpec((1, 1, N_QUBITS, S), lambda b, h: (b, h, 0, 0)),
                  pl.BlockSpec((1, 1, S, d_k), lambda b, h: (b, h, 0, 0)),
                  _const_spec((2, N_QUBITS), lambda b, h: (0, 0))],
        out_specs=pl.BlockSpec((1, 1, S, d_k), lambda b, h: (b, h, 0, 0)),
        compiler_params=pltpu.CompilerParams(
            dimension_semantics=("parallel", "parallel")),
        cost_estimate=pl.CostEstimate(flops=flops, transcendentals=trans,
                                      bytes_accessed=bytes_acc),
    )(q_heads, kt_heads, v_heads, trig)


# ------------------------------------------------------------------------ full forward

def quantum_self_attention(x, wq, bq, wk, bk, wv, bv, wo, bo, attn_params, *,
                           nhead, use_bf16=False):
    """QuantumSelfAttention forward. Weights are stored (in, out): y = x @ W + b."""
    B, S, D = x.shape
    d_k = D // nhead
    assert d_k >= N_QUBITS, "d_k must be >= n_qubits"
    qw = N_QUBITS * nhead
    cdt = jnp.bfloat16 if use_bf16 else jnp.float32      # MXU compute dtype

    # Prune W_q / W_k to the 4 "quantum" columns per head and fuse with W_v: one MXU
    # pass, no unused q/k columns ever computed or DMA'd.  Pre-cast HBM-side.
    cols = np.concatenate([np.arange(h * d_k, h * d_k + N_QUBITS)
                           for h in range(nhead)])
    w_fused = jnp.concatenate([wq[:, cols], wk[:, cols], wv], axis=1).astype(cdt)
    b_fused = jnp.concatenate([bq[:, cols], bk[:, cols], bv], axis=1).astype(jnp.float32)
    trig = jnp.stack([jnp.cos(attn_params), jnp.sin(attn_params)],
                     axis=0).astype(jnp.float32)

    # 1) fused [Wq_sub | Wk_sub | Wv] projection, M = B*S folded into the MXU M dim.
    x2d = x.reshape(B * S, D).astype(cdt)
    qkv2d = _projection(x2d, w_fused, b_fused)                  # (B*S, 8H + D), f32

    # Wrapper-side layout plumbing (cheap XLA copies): split per head so the attention
    # kernel addresses each (batch, head) block with a plain BlockSpec (no 4-wide
    # dynamic lane slicing in-kernel); K is pre-transposed so the score term is a pure
    # VPU broadcast instead of a K=1 MXU outer product.
    qq = qkv2d[:, :qw].reshape(B, S, nhead, N_QUBITS).transpose(0, 2, 1, 3)          # (B,H,S,4)
    kqt = qkv2d[:, qw:2 * qw].reshape(B, S, nhead, N_QUBITS).transpose(0, 2, 3, 1)   # (B,H,4,S)
    v = qkv2d[:, 2 * qw:].reshape(B, S, nhead, d_k).transpose(0, 2, 1, 3).astype(cdt)  # (B,H,S,dk)

    # 2) quantum-score attention core per (batch, head).
    ctx = _attention_core(qq, kqt, v, trig)                     # (B, H, S, d_k), f32

    # 3) output projection W_o, again with M = B*S on the MXU M dim.
    ctx2d = ctx.transpose(0, 2, 1, 3).reshape(B * S, D).astype(cdt)
    out2d = _projection(ctx2d, wo.astype(cdt), bo.astype(jnp.float32))
    # TODO(synk): while D < 128 the (.., D) outputs are masked (D/128-lane) stores; pad
    # D to 128 (or flatten to (B, S*D)) for lane-dense vst if production D stays < 128.
    return out2d.reshape(B, S, D)


# --------------------------------------------------------------------------- reference

def reference_forward(x, wq, bq, wk, bk, wv, bv, wo, bo, attn_params, nhead):
    """Pure-JAX reference of the same forward (same closed-form <Z_0>), f32-accurate."""
    hp = jax.lax.Precision.HIGHEST
    B, S, D = x.shape
    d_k = D // nhead
    Q = (jnp.matmul(x, wq, precision=hp) + bq).reshape(B, S, nhead, d_k)
    K = (jnp.matmul(x, wk, precision=hp) + bk).reshape(B, S, nhead, d_k)
    V = (jnp.matmul(x, wv, precision=hp) + bv).reshape(B, S, nhead, d_k)

    def norm(a):
        amin = jnp.min(a, axis=-1, keepdims=True)
        amax = jnp.max(a, axis=-1, keepdims=True)
        return (a - amin) / (amax - amin + 1e-8) * jnp.float32(np.pi)

    qn = jnp.transpose(norm(Q[..., :N_QUBITS]), (0, 2, 1, 3))   # (B,H,S,4)
    kn = jnp.transpose(norm(K[..., :N_QUBITS]), (0, 2, 1, 3))   # (B,H,S,4)
    cp = jnp.cos(attn_params)
    sp = jnp.sin(attn_params)
    terms = (cp * jnp.cos(qn))[:, :, :, None, :] \
        - (sp * jnp.sin(qn))[:, :, :, None, :] * jnp.cos(kn)[:, :, None, :, :]
    scores = jnp.prod(terms[..., 1:], axis=-1)                  # (B,H,S,S)
    w = jax.nn.softmax(scores / jnp.sqrt(jnp.float32(d_k)), axis=-1)
    Vh = jnp.transpose(V, (0, 2, 1, 3))                         # (B,H,S,dk)
    out = jnp.einsum('bhij,bhjd->bhid', w, Vh, precision=hp)
    out = jnp.transpose(out, (0, 2, 1, 3)).reshape(B, S, D)
    return jnp.matmul(out, wo, precision=hp) + bo


# TODO(synk): the per-element progress print() logging in the PyTorch forward is
# host-side logging only and has no kernel equivalent; it is omitted.

if __name__ == "__main__":
    B, S, D, H = 2, 8, 32, 4                                    # d_k = 8 >= n_qubits

    key = jax.random.PRNGKey(0)
    keys = jax.random.split(key, 10)
    x = jax.random.normal(keys[0], (B, S, D), jnp.float32)

    def lin_init(kw, kb, fan_in, fan_out):
        bound = 1.0 / np.sqrt(fan_in)
        w = jax.random.uniform(kw, (fan_in, fan_out), jnp.float32, -bound, bound)
        b = jax.random.uniform(kb, (1, fan_out), jnp.float32, -bound, bound)
        return w, b

    wq, bq = lin_init(keys[1], keys[2], D, D)
    wk, bk = lin_init(keys[3], keys[4], D, D)
    wv, bv = lin_init(keys[5], keys[6], D, D)
    wo, bo = lin_init(keys[7], keys[8], D, D)
    attn_params = 0.1 * jax.random.normal(keys[9], (N_QUBITS,), jnp.float32)

    out = quantum_self_attention(x, wq, bq, wk, bk, wv, bv, wo, bo,
                                 attn_params, nhead=H, use_bf16=False)
    out = jax.block_until_ready(out)

    ref = reference_forward(x, wq, bq, wk, bk, wv, bv, wo, bo, attn_params, H)
    # exact softmax divide (no approx reciprocal) + f32 MXU path -> tightened tolerance
    np.testing.assert_allclose(np.asarray(out), np.asarray(ref), rtol=1e-3, atol=1e-3)
    print("KERNEL_OK")
</pallas_src>

<mosaic_0001>
module attributes {stable_mosaic.version = 11 : i64} {
  func.func @_probe(%arg0: i32, %arg1: memref<8x128xf32, #tpu.memory_space<vmem>>, %arg2: memref<8x128xf32, #tpu.memory_space<vmem>>) attributes {dimension_semantics = [#tpu.dimension_semantics<arbitrary>], iteration_bounds = array<i64: 1>, scalar_prefetch = 0 : i64, scratch_operands = 0 : i64, tpu.core_type = #tpu.core_type<tc>, window_params = [{pipeline_mode = #tpu.pipeline_mode<synchronous>, transform_indices = @transform_0, window_bounds = array<i64: 8, 128>}, {pipeline_mode = #tpu.pipeline_mode<synchronous>, transform_indices = @transform_1, window_bounds = array<i64: 8, 128>}]} {
    %c0 = arith.constant 0 : index
    %c0_0 = arith.constant 0 : index
    %0 = vector.load %arg1[%c0, %c0_0] : memref<8x128xf32, #tpu.memory_space<vmem>>, vector<8x128xf32>
    %cst = arith.constant 1.000000e+00 : f32
    %1 = vector.broadcast %cst : f32 to vector<8x128xf32>
    %2 = arith.addf %0, %1 : vector<8x128xf32>
    %c0_1 = arith.constant 0 : index
    %c0_2 = arith.constant 0 : index
    %3 = vector.load %arg2[%c0_1, %c0_2] : memref<8x128xf32, #tpu.memory_space<vmem>>, vector<8x128xf32>
    tpu.vector_store %arg2[%c0_1, %c0_2], %2 {strides = array<i32>} : memref<8x128xf32, #tpu.memory_space<vmem>>, vector<8x128xf32>,
    return
  }
  func.func @transform_0(%arg0: i32) -> (i32, i32) {
    %c0_i32 = arith.constant 0 : i32
    %c0_i32_0 = arith.constant 0 : i32
    %c0_i32_1 = arith.constant 0 : i32
    return %c0_i32, %c0_i32_0 : i32, i32
  }
  func.func @transform_1(%arg0: i32) -> (i32, i32) {
    %c0_i32 = arith.constant 0 : i32
    %c0_i32_0 = arith.constant 0 : i32
    %c0_i32_1 = arith.constant 0 : i32
    return %c0_i32, %c0_i32_0 : i32, i32
  }
}

module attributes {stable_mosaic.version = 11 : i64} {
  func.func @_proj_kernel(%arg0: i32, %arg1: memref<16x32xf32, #tpu.memory_space<vmem>>, %arg2: memref<32x64xf32, #tpu.memory_space<vmem>>, %arg3: memref<1x64xf32, #tpu.memory_space<vmem>>, %arg4: memref<16x64xf32, #tpu.memory_space<vmem>>) attributes {dimension_semantics = [#tpu.dimension_semantics<parallel>], iteration_bounds = array<i64: 1>, scalar_prefetch = 0 : i64, scratch_operands = 0 : i64, tpu.core_type = #tpu.core_type<tc>, window_params = [{transform_indices = @transform_0, window_bounds = array<i64: 16, 32>}, {pipeline_mode = #tpu.pipeline_mode<synchronous>, transform_indices = @transform_1, window_bounds = array<i64: 32, 64>}, {pipeline_mode = #tpu.pipeline_mode<synchronous>, transform_indices = @transform_2, window_bounds = array<i64: 1, 64>}, {transform_indices = @transform_3, window_bounds = array<i64: 16, 64>}]} {
    %c0 = arith.constant 0 : index
    %c0_0 = arith.constant 0 : index
    %0 = vector.load %arg1[%c0, %c0_0] : memref<16x32xf32, #tpu.memory_space<vmem>>, vector<16x32xf32>
    %c0_1 = arith.constant 0 : index
    %c0_2 = arith.constant 0 : index
    %1 = vector.load %arg2[%c0_1, %c0_2] : memref<32x64xf32, #tpu.memory_space<vmem>>, vector<32x64xf32>
    %cst = arith.constant dense<0.000000e+00> : vector<16x64xf32>
    %2 = tpu.matmul %0, %1, %cst {dimension_numbers = #tpu.dot_dimension_numbers<[1], [0], [0], [1], [0, 0, 1, 1], [], []>} : vector<16x32xf32>, vector<32x64xf32>, vector<16x64xf32> -> vector<16x64xf32>
    %c0_3 = arith.constant 0 : index
    %c0_4 = arith.constant 0 : index
    %3 = vector.load %arg3[%c0_3, %c0_4] : memref<1x64xf32, #tpu.memory_space<vmem>>, vector<1x64xf32>
    %4 = vector.broadcast %3 : vector<1x64xf32> to vector<16x64xf32>
    %5 = arith.addf %2, %4 : vector<16x64xf32>
    %c0_5 = arith.constant 0 : index
    %c0_6 = arith.constant 0 : index
    %6 = vector.load %arg4[%c0_5, %c0_6] : memref<16x64xf32, #tpu.memory_space<vmem>>, vector<16x64xf32>
    tpu.vector_store %arg4[%c0_5, %c0_6], %5 {strides = array<i32>} : memref<16x64xf32, #tpu.memory_space<vmem>>, vector<16x64xf32>,
    return
  }
  func.func @transform_0(%arg0: i32) -> (i32, i32) {
    %c0_i32 = arith.constant 0 : i32
    %c0_i32_0 = arith.constant 0 : i32
    return %arg0, %c0_i32 : i32, i32
  }
  func.func @transform_1(%arg0: i32) -> (i32, i32) {
    %c0_i32 = arith.constant 0 : i32
    %c0_i32_0 = arith.constant 0 : i32
    %c0_i32_1 = arith.constant 0 : i32
    return %c0_i32, %c0_i32_0 : i32, i32
  }
  func.func @transform_2(%arg0: i32) -> (i32, i32) {
    %c0_i32 = arith.constant 0 : i32
    %c0_i32_0 = arith.constant 0 : i32
    %c0_i32_1 = arith.constant 0 : i32
    return %c0_i32, %c0_i32_0 : i32, i32
  }
  func.func @transform_3(%arg0: i32) -> (i32, i32) {
    %c0_i32 = arith.constant 0 : i32
    %c0_i32_0 = arith.constant 0 : i32
    return %arg0, %c0_i32 : i32, i32
  }
}

</mosaic_0001>

<llo_original>
// kernel: tpu_custom_call.1
$region0: #{tpu_custom_call.1}
  #allocation0 [shape = 'u32[]', space=smem, size = 0x4, offset = 0x4, fixed_abs, tag = 'smem constant byte address 0x4 - core index']
  #allocation1 [shape = 'u32[144,128]{1,0:T(1,128)}', space=vmem, size = 0x12000, scoped, tag = 'internal scratch']
  %s0 = inlined_call_operand.hbm [shape: f32[8,128], index: 0, kind: input, shape index: {}]
  %s1 = inlined_call_operand.hbm [shape: f32[8,128], index: 1, kind: output, shape index: {}]
  %s2 = sld [smem:[#allocation0]]
  $region18: #{tpu_custom_call.1} parent=0
    _
  %s4 = ssub.s32 1, %s2
  %s5 = scalar_select 0, %s4, %s2
  $region1: #{tpu_custom_call.1} parent=0
    #allocation2 [shape = 'u8[4096]{0}', space=vmem, size = 0x1000, scoped, tag = 'input window, operand 0, single buffered']
    #allocation3 [shape = 's32[1]{0}', space=sflag, size = 0x4, scoped, tag = 'scoped memory for tpu_custom_call.1']
    #allocation4 [shape = 's32[1]{0}', space=sflag, size = 0x4, scoped, tag = 'scoped memory for tpu_custom_call.1']
    #allocation5 [shape = 'u8[4096]{0}', space=vmem, size = 0x1000, scoped, tag = 'output window, operand 0, single buffered']
    %6 = vsyncpa [#allocation3], 0
    %7 = vsyncpa [#allocation4], 0
    // Predicated region
    $region2: #{tpu_custom_call.1} parent=1 // pred_check
      _
    $region3: #{tpu_custom_call.1} parent=1 // pred_check_branch
      %9 = sbr.rel (0) target = $region5
    $region4: #{tpu_custom_call.1} parent=1 // pred_region
      %s11 = ssub.s32 128, 128
      %12 = vsyncadd [#allocation3], %s11
      %s14 = sshll.u32 [#allocation2], 4
      %s15 = int_to_ptr.vmem [resolvable:$true] %s14
      %17 = dma.hbm_to_vmem [thread:$0]  %s0, 128, %s15, [#allocation3]
    $region5: #{tpu_custom_call.1} parent=1 // pred_fallthru
      _
    // Predicated region
    $region6: #{tpu_custom_call.1} parent=1 // pred_check
      _
    $region7: #{tpu_custom_call.1} parent=1 // pred_check_branch
      %19 = sbr.rel (0) target = $region9
    $region8: #{tpu_custom_call.1} parent=1 // pred_region
      %20 = dma.done [#allocation3], 128
    $region9: #{tpu_custom_call.1} parent=1 // pred_fallthru
      _
    %v21 = vld [vmem:[#allocation2] sm:$0xff]
    %v22 = vadd.f32 %v21, 1.0
    %23 = vst [vmem:[#allocation5] sm:$0xff] %v22
    // Predicated region
    $region10: #{tpu_custom_call.1} parent=1 // pred_check
      _
    $region11: #{tpu_custom_call.1} parent=1 // pred_check_branch
      %25 = sbr.rel (0) target = $region13
    $region12: #{tpu_custom_call.1} parent=1 // pred_region
      %s27 = ssub.s32 128, 128
      %28 = vsyncadd [#allocation4], %s27
      %s30 = sshll.u32 [#allocation5], 4
      %s31 = int_to_ptr.vmem [resolvable:$true] %s30
      %33 = dma.vmem_to_hbm [thread:$0]  %s31, 128, %s1, [#allocation4]
    $region13: #{tpu_custom_call.1} parent=1 // pred_fallthru
      _
    // Predicated region
    $region14: #{tpu_custom_call.1} parent=1 // pred_check
      _
    $region15: #{tpu_custom_call.1} parent=1 // pred_check_branch
      %35 = sbr.rel (0) target = $region17
    $region16: #{tpu_custom_call.1} parent=1 // pred_region
      %36 = dma.done [#allocation4], 128
    $region17: #{tpu_custom_call.1} parent=1 // pred_fallthru
      _
    %37 = vsyncpa [#allocation3], 1
    %38 = vsyncpa [#allocation4], 1

// kernel: tpu_custom_call.1
$region0: #{tpu_custom_call.1}
  #allocation0 [shape = 'u32[]', space=smem, size = 0x4, offset = 0x4, fixed_abs, tag = 'smem constant byte address 0x4 - core index']
  #allocation1 [shape = 'u32[144,128]{1,0:T(1,128)}', space=vmem, size = 0x12000, scoped, tag = 'internal scratch']
  %s0 = inlined_call_operand.hbm [shape: f32[16,32], index: 0, kind: input, shape index: {}]
  %s1 = inlined_call_operand.hbm [shape: f32[32,64], index: 1, kind: input, shape index: {}]
  %s2 = inlined_call_operand.vmem [shape: f32[1,64], index: 2, kind: input, shape index: {}]
  %s3 = inlined_call_operand.hbm [shape: f32[16,64], index: 3, kind: output, shape index: {}]
  %s4 = sld [smem:[#allocation0]]
  $region30: #{tpu_custom_call.1} parent=0
    _
  %s6 = ssub.s32 1, %s4
  %s7 = scalar_select 0, %s6, %s4
  $region1: #{tpu_custom_call.1} parent=0
    #allocation2 [shape = 'u8[8192]{0}', space=vmem, size = 0x2000, scoped, tag = 'input window, operand 0, single buffered']
    #allocation3 [shape = 's32[1]{0}', space=sflag, size = 0x4, scoped, tag = 'scoped memory for tpu_custom_call.1']
    #allocation4 [shape = 's32[1]{0}', space=sflag, size = 0x4, scoped, tag = 'scoped memory for tpu_custom_call.1']
    #allocation5 [shape = 'u8[16384]{0}', space=vmem, size = 0x4000, scoped, tag = 'input window, operand 1, single buffered']
    #allocation6 [shape = 's32[1]{0}', space=sflag, size = 0x4, scoped, tag = 'scoped memory for tpu_custom_call.1']
    #allocation7 [shape = 'u8[8192]{0}', space=vmem, size = 0x2000, scoped, tag = 'output window, operand 0, single buffered']
    %8 = vsyncpa [#allocation3], 0
    %9 = vsyncpa [#allocation6], 0
    %10 = vsyncpa [#allocation4], 0
    // Predicated region
    $region2: #{tpu_custom_call.1} parent=1 // pred_check
      _
    $region3: #{tpu_custom_call.1} parent=1 // pred_check_branch
      %12 = sbr.rel (0) target = $region5
    $region4: #{tpu_custom_call.1} parent=1 // pred_region
      %s14 = ssub.s32 256, 256
      %15 = vsyncadd [#allocation3], %s14
      %s16 = sshll.u32 [#allocation2], 4
      %s17 = int_to_ptr.vmem [resolvable:$true] %s16
      %22 = dma.hbm_to_vmem [thread:$0]  %s0, 256, %s17, [#allocation3], 128, 128, 8
    $region5: #{tpu_custom_call.1} parent=1 // pred_fallthru
      _
    // Predicated region
    $region6: #{tpu_custom_call.1} parent=1 // pred_check
      _
    $region7: #{tpu_custom_call.1} parent=1 // pred_check_branch
      %24 = sbr.rel (0) target = $region9
    $region8: #{tpu_custom_call.1} parent=1 // pred_region
      %s26 = ssub.s32 512, 512
      %27 = vsyncadd [#allocation6], %s26
      %s28 = sshll.u32 [#allocation5], 4
      %s29 = int_to_ptr.vmem [resolvable:$true] %s28
      %34 = dma.hbm_to_vmem [thread:$0]  %s1, 512, %s29, [#allocation6], 128, 128, 8
    $region9: #{tpu_custom_call.1} parent=1 // pred_fallthru
      _
    // Predicated region
    $region10: #{tpu_custom_call.1} parent=1 // pred_check
      _
    $region11: #{tpu_custom_call.1} parent=1 // pred_check_branch
      %36 = sbr.rel (0) target = $region13
    $region12: #{tpu_custom_call.1} parent=1 // pred_region
      _
    $region13: #{tpu_custom_call.1} parent=1 // pred_fallthru
      _
    // Predicated region
    $region14: #{tpu_custom_call.1} parent=1 // pred_check
      _
    $region15: #{tpu_custom_call.1} parent=1 // pred_check_branch
      %38 = sbr.rel (0) target = $region17
    $region16: #{tpu_custom_call.1} parent=1 // pred_region
      %39 = dma.done [#allocation3], 256
    $region17: #{tpu_custom_call.1} parent=1 // pred_fallthru
      _
    // Predicated region
    $region18: #{tpu_custom_call.1} parent=1 // pred_check
      _
    $region19: #{tpu_custom_call.1} parent=1 // pred_check_branch
      %41 = sbr.rel (0) target = $region21
    $region20: #{tpu_custom_call.1} parent=1 // pred_region
      %42 = dma.done [#allocation6], 512
    $region21: #{tpu_custom_call.1} parent=1 // pred_fallthru
      _
    %v43 = vld [vmem:[#allocation2] sm:$0xff]
    %v44 = vld [vmem:[#allocation2 + $0x8] sm:$0xff]
    %v45 = vld [vmem:[#allocation5] sm:$0xff]
    %v46 = vld [vmem:[#allocation5 + $0x8] sm:$0xff]
    %v47 = vld [vmem:[#allocation5 + $0x10] sm:$0xff]
    %v48 = vld [vmem:[#allocation5 + $0x18] sm:$0xff]
    %v49 = vld [vmem:[%s2] sm:$0x1]
    %v51 = vlaneseq
    %v52 = vshrl.u32 %v51, 7
    %v53 = vsub.s32 0, %v52
    %v54 = vrot.slane %v49, %v53
    %vm56 = vcmask 261120
    %v58 = vsel %vm56, %v43, 0
    %v61 = vsel %vm56, %v44, 0
    %63 = vmatprep.subr.mxu0 0.0
    %64 = vmatpush1.msra.mxu0 0.0
    %65 = vmatprep.subr.mxu0 0.0
    %66 = vmatpush1.msra.mxu0 0.0
    %67 = vmatprep.subr.mxu0 0.0
    %68 = vmatpush1.msra.mxu0 0.0
    %69 = vmatprep.subr.mxu0 0.0
    %70 = vmatpush1.msra.mxu0 0.0
    %71 = vmatprep.subr.mxu0 0.0
    %72 = vmatpush1.msra.mxu0 0.0
    %73 = vmatprep.subr.mxu0 0.0
    %74 = vmatpush1.msra.mxu0 0.0
    %75 = vmatprep.subr.mxu0 0.0
    %76 = vmatpush1.msra.mxu0 0.0
    %77 = vmatprep.subr.mxu0 0.0
    %78 = vmatpush1.msra.mxu0 0.0
    %79 = vmatprep.subr.mxu0 0.0
    %80 = vmatpush1.msra.mxu0 0.0
    %81 = vmatprep.subr.mxu0 0.0
    %82 = vmatpush1.msra.mxu0 0.0
    %83 = vmatprep.subr.mxu0 0.0
    %84 = vmatpush1.msra.mxu0 0.0
    %85 = vmatprep.subr.mxu0 0.0
    %86 = vmatpush1.msra.mxu0 0.0
    %87 = vmatprep.subr.mxu0 0.0
    %88 = vmatpush1.msra.mxu0 %v48
    %89 = vmatprep.subr.mxu0 0.0
    %90 = vmatpush1.msra.mxu0 %v47
    %91 = vmatprep.subr.mxu0 0.0
    %92 = vmatpush1.msra.mxu0 %v46
    %93 = vmatprep.subr.mxu0 0.0
    %94 = vmatpush1.msra.mxu0 %v45
    %95 = vmatprep.subr.mxu0 0.0
    %96 = vmatpush2.msra.mxu0 0.0
    %97 = vmatprep.subr.mxu0 0.0
    %98 = vmatpush2.msra.mxu0 0.0
    %99 = vmatprep.subr.mxu0 0.0
    %100 = vmatpush2.msra.mxu0 0.0
    %101 = vmatprep.subr.mxu0 0.0
    %102 = vmatpush2.msra.mxu0 0.0
    %103 = vmatprep.subr.mxu0 0.0
    %104 = vmatpush2.msra.mxu0 0.0
    %105 = vmatprep.subr.mxu0 0.0
    %106 = vmatpush2.msra.mxu0 0.0
    %107 = vmatprep.subr.mxu0 0.0
    %108 = vmatpush2.msra.mxu0 0.0
    %109 = vmatprep.subr.mxu0 0.0
    %110 = vmatpush2.msra.mxu0 0.0
    %111 = vmatprep.subr.mxu0 0.0
    %112 = vmatpush2.msra.mxu0 0.0
    %113 = vmatprep.subr.mxu0 0.0
    %114 = vmatpush2.msra.mxu0 0.0
    %115 = vmatprep.subr.mxu0 0.0
    %116 = vmatpush2.msra.mxu0 0.0
    %117 = vmatprep.subr.mxu0 0.0
    %118 = vmatpush2.msra.mxu0 0.0
    %119 = vmatprep.subr.mxu0 0.0
    %120 = vmatpush2.msra.mxu0 0.0
    %121 = vmatprep.subr.mxu0 0.0
    %122 = vmatpush2.msra.mxu0 0.0
    %123 = vmatprep.subr.mxu0 0.0
    %124 = vmatpush2.msra.mxu0 0.0
    %125 = vmatprep.subr.mxu0 0.0
    %126 = vmatpush2.msra.mxu0 0.0
    %127 = vmatprep.mubr.f32.mxu0 0.0
    %128 = vmatmul.mubr.f32.gmra.mxu0 %v58
    %v129 = vpop.f32.mrf.mxu0
    %v130 = vadd.f32 %v54, %v129
    %v131 = vpop.f32.mrf.mxu0
    %132 = vmatprep.mubr.f32.mxu0 0.0
    %133 = vmatmul.mubr.f32.gmra.mxu0 %v61
    %v134 = vpop.f32.mrf.mxu0
    %v135 = vadd.f32 %v54, %v134
    %v136 = vpop.f32.mrf.mxu0
    %137 = vdwg.mxu0
    %vm138 = vcmask 523264
    %139 = vst.msk [vmem:[#allocation7] sm:$0xff] %vm138, %v130
    %140 = vst.msk [vmem:[#allocation7 + $0x8] sm:$0xff] %vm138, %v135
    // Predicated region
    $region22: #{tpu_custom_call.1} parent=1 // pred_check
      _
    $region23: #{tpu_custom_call.1} parent=1 // pred_check_branch
      %142 = sbr.rel (0) target = $region25
    $region24: #{tpu_custom_call.1} parent=1 // pred_region
      %s144 = ssub.s32 256, 256
      %145 = vsyncadd [#allocation4], %s144
      %s146 = sshll.u32 [#allocation7], 4
      %s147 = int_to_ptr.vmem [resolvable:$true] %s146
      %152 = dma.vmem_to_hbm [thread:$0]  %s147, 256, %s3, [#allocation4], 128, 128, 8
    $region25: #{tpu_custom_call.1} parent=1 // pred_fallthru
      _
    // Predicated region
    $region26: #{tpu_custom_call.1} parent=1 // pred_check
      _
    $region27: #{tpu_custom_call.1} parent=1 // pred_check_branch
      %154 = sbr.rel (0) target = $region29
    $region28: #{tpu_custom_call.1} parent=1 // pred_region
      %155 = dma.done [#allocation4], 256
    $region29: #{tpu_custom_call.1} parent=1 // pred_fallthru
      _
    %156 = vsyncpa [#allocation3], 1
    %157 = vsyncpa [#allocation6], 1
    %158 = vsyncpa [#allocation4], 1

</llo_original>
